<compile_context>
chip_gen: v7x
topology: tpu7x:2x2x1
jax: 0.10.0
libtpu: 0.0.40
codegen_flags: <defaults>
</compile_context>

<pallas_src>
import math

import jax
import jax.numpy as jnp
from jax.experimental import pallas as pl
from jax.experimental.pallas import tpu as pltpu


# ---------------------------------------------------------------------------
# Kernel: identity materialization of the positional-embedding parameter.
# Whole array VMEM-resident; single full-vreg copy, no grid.
# ---------------------------------------------------------------------------
def _symbol_encoding_kernel(pos_ref, out_ref):
    out_ref[...] = pos_ref[...]


def _lane_dense_copy(flat_2d):
    """Identity pallas_call on a (rows, 128) lane-dense slab."""
    n = flat_2d.size
    itemsize = jnp.dtype(flat_2d.dtype).itemsize
    return pl.pallas_call(
        _symbol_encoding_kernel,
        out_shape=jax.ShapeDtypeStruct(flat_2d.shape, flat_2d.dtype),
        in_specs=[pl.BlockSpec(memory_space=pltpu.MemorySpace.VMEM)],
        out_specs=pl.BlockSpec(memory_space=pltpu.MemorySpace.VMEM),
        input_output_aliases={0: 0},
        cost_estimate=pl.CostEstimate(
            flops=0, transcendentals=0, bytes_accessed=2 * n * itemsize),
    )(flat_2d)


def symbol_encoding_forward(position_embeddings):
    """Forward of SymbolEncoding: returns the positional embeddings.

    position_embeddings: (1, d_model, num_contexts, f_len) float32
    """
    shape = position_embeddings.shape
    n = position_embeddings.size

    if n % 128 == 0:
        # Default shape (1, 32, 4, 24) -> n = 3072 -> (24, 128): unmasked full-vreg path.
        flat = position_embeddings.reshape(n // 128, 128)
        return _lane_dense_copy(flat).reshape(shape)

    # Fallback (never taken for the module defaults): pad the flattened parameter up to a
    # multiple of 128 in the wrapper so the kernel stays on the unmasked-store path, then
    # strip the pad afterwards.
    pad = (-n) % 128
    flat = jnp.pad(position_embeddings.reshape(-1), (0, pad)).reshape(-1, 128)
    out = _lane_dense_copy(flat).reshape(-1)[:n]
    return out.reshape(shape)


# ---------------------------------------------------------------------------
# Parameter construction mirroring nn.init.xavier_uniform_ on the zeros parameter.
# PyTorch fan computation for a 4-D tensor (1, d_model, C, L):
#   receptive_field = C * L, fan_in = d_model * C * L, fan_out = 1 * C * L
# ---------------------------------------------------------------------------
def init_symbol_encoding(key, num_contexts=4, d_model=32, f_len=24):
    receptive = num_contexts * f_len
    fan_in = d_model * receptive
    fan_out = 1 * receptive
    bound = math.sqrt(6.0 / (fan_in + fan_out))
    return jax.random.uniform(
        key, (1, d_model, num_contexts, f_len),
        minval=-bound, maxval=bound, dtype=jnp.float32)


if __name__ == "__main__":
    # Defaults from the module: num_contexts=4, d_model=32, f_len=24.
    NUM_CONTEXTS, D_MODEL, F_LEN = 4, 32, 24

    key = jax.random.PRNGKey(0)
    position_embeddings = init_symbol_encoding(
        key, num_contexts=NUM_CONTEXTS, d_model=D_MODEL, f_len=F_LEN)

    fwd = jax.jit(symbol_encoding_forward)
    out = fwd(position_embeddings)
    jax.block_until_ready(out)

    assert out.shape == (1, D_MODEL, NUM_CONTEXTS, F_LEN), out.shape
    assert out.dtype == jnp.float32
    # forward() returns the parameter unchanged
    assert bool(jnp.array_equal(out, position_embeddings))
    assert bool(jnp.all(jnp.isfinite(out)))
    print("KERNEL_OK")
</pallas_src>

<mosaic_0001>
module attributes {stable_mosaic.version = 11 : i64} {
  func.func @_symbol_encoding_kernel(%arg0: memref<24x128xf32, #tpu.memory_space<vmem>>, %arg1: memref<24x128xf32, #tpu.memory_space<vmem>>) attributes {dimension_semantics = [], scalar_prefetch = 0 : i64, scratch_operands = 0 : i64, tpu.core_type = #tpu.core_type<tc>} {
    %c0 = arith.constant 0 : index
    %c0_0 = arith.constant 0 : index
    %0 = vector.load %arg0[%c0, %c0_0] : memref<24x128xf32, #tpu.memory_space<vmem>>, vector<24x128xf32>
    %c0_1 = arith.constant 0 : index
    %c0_2 = arith.constant 0 : index
    %1 = vector.load %arg1[%c0_1, %c0_2] : memref<24x128xf32, #tpu.memory_space<vmem>>, vector<24x128xf32>
    tpu.vector_store %arg1[%c0_1, %c0_2], %0 {strides = array<i32>} : memref<24x128xf32, #tpu.memory_space<vmem>>, vector<24x128xf32>,
    return
  }
}

</mosaic_0001>

<llo_original>
// kernel: symbol_encoding_forward.1
$region0: #{symbol_encoding_forward.1}
  #allocation0 [shape = 'u32[]', space=smem, size = 0x4, offset = 0x4, fixed_abs, tag = 'smem constant byte address 0x4 - core index']
  #allocation1 [shape = 'u32[144,128]{1,0:T(1,128)}', space=vmem, size = 0x12000, scoped, tag = 'internal scratch']
  %s0 = inlined_call_operand.vmem [shape: f32[24,128], index: 0, kind: input, shape index: {}, may-alias: {0,1}]
  %s1 = inlined_call_operand.vmem [shape: f32[24,128], index: 1, kind: output, shape index: {}, may-alias: {0,1}]
  %s2 = sld [smem:[#allocation0]]
  $region14: #{symbol_encoding_forward.1} parent=0
    _
  %s4 = ssub.s32 1, %s2
  %s5 = scalar_select 0, %s4, %s2
  // Predicated region
  $region2: #{symbol_encoding_forward.1} parent=0 // pred_check
    _
  $region3: #{symbol_encoding_forward.1} parent=0 // pred_check_branch
    %7 = sbr.rel (0) target = $region5
  $region4: #{symbol_encoding_forward.1} parent=0 // pred_region
    _
  $region5: #{symbol_encoding_forward.1} parent=0 // pred_fallthru
    _
  %v8 = vld [vmem:[%s0] sm:$0xff]
  %v9 = vld [vmem:[%s0 + $0x8] sm:$0xff]
  %v10 = vld [vmem:[%s0 + $0x10] sm:$0xff]
  %11 = vst [vmem:[%s1] sm:$0xff] %v8
  %12 = vst [vmem:[%s1 + $0x8] sm:$0xff] %v9
  %13 = vst [vmem:[%s1 + $0x10] sm:$0xff] %v10
  // Predicated region
  $region6: #{symbol_encoding_forward.1} parent=0 // pred_check
    _
  $region7: #{symbol_encoding_forward.1} parent=0 // pred_check_branch
    %15 = sbr.rel (0) target = $region9
  $region8: #{symbol_encoding_forward.1} parent=0 // pred_region
    _
  $region9: #{symbol_encoding_forward.1} parent=0 // pred_fallthru
    _
  // Predicated region
  $region10: #{symbol_encoding_forward.1} parent=0 // pred_check
    _
  $region11: #{symbol_encoding_forward.1} parent=0 // pred_check_branch
    %17 = sbr.rel (0) target = $region13
  $region12: #{symbol_encoding_forward.1} parent=0 // pred_region
    _
  $region13: #{symbol_encoding_forward.1} parent=0 // pred_fallthru
    _

</llo_original>
